<compile_context>
chip_gen: v5e
topology: v5e:2x2
jax: 0.10.0
libtpu: 0.0.40
codegen_flags: <defaults>
</compile_context>

<pallas_src>
import jax
import jax.numpy as jnp
from jax import lax
from jax.experimental import pallas as pl
from jax.experimental.pallas import tpu as pltpu

INPUT_SIZE = 64
HIDDEN = 128
NUM_LAYERS = 2   # hard-wired: 2 stacked tanh-RNN layers
NUM_CLASSES = 40


def _rnn_fc_kernel(x_ref,                      # (T*Bp, D)   bf16, time-major flat
                   wih0_ref, b0_ref,           # (D, H) bf16, (1, H) f32
                   rhs_ref,                    # (2H, 2H) bf16  [[Whh0,Wih1],[0,Whh1]]
                   b1_ref,                     # (1, H) f32
                   wfc_ref, bfc_ref,           # (H, Cp) bf16, (1, Cp) f32
                   out_ref,                    # (Bp, Cp) f32
                   proj_sc):                   # (T*Bp, H) f32 scratch
    Bp = out_ref.shape[0]
    TB = x_ref.shape[0]
    H = b0_ref.shape[1]
    T = TB // Bp
    bf16 = jnp.bfloat16

    # ---- Hoisted layer-0 input projection: ONE (T*Bp,D)@(D,H) GEMM + bias ----
    proj_sc[...] = (
        jnp.dot(x_ref[...], wih0_ref[...], preferred_element_type=jnp.float32)
        + b0_ref[...])

    # Hoist the layer-1 bias broadcast out of the unrolled loop.
    b1_full = jnp.broadcast_to(b1_ref[...], (Bp, H))

    # ---- Wave 0: layer-0 step 0 only (both carried states are zero) ----
    h0 = jnp.tanh(proj_sc[pl.ds(0, Bp), :]).astype(bf16)      # h0_0
    h1 = jnp.zeros((Bp, H), bf16)                             # h1_{-1} = 0

    # ---- Waves 1..T-1: layer-0 step w and layer-1 step w-1, fused MXU tile ----
    for w in range(1, T):                                     # static, unrolled
        lhs = jnp.concatenate([h0, h1], axis=-1)              # (Bp, 2H) bf16
        mm = jnp.dot(lhs, rhs_ref[...],
                     preferred_element_type=jnp.float32)      # (Bp, 2H) f32
        h0 = jnp.tanh(proj_sc[pl.ds(w * Bp, Bp), :] + mm[:, :H]).astype(bf16)
        h1 = jnp.tanh(b1_full + mm[:, H:]).astype(bf16)

    # ---- Wave T: layer-1 step T-1 only (left half of fused matmul unused) ----
    lhs = jnp.concatenate([h0, h1], axis=-1)
    mm = jnp.dot(lhs, rhs_ref[...], preferred_element_type=jnp.float32)
    h1 = jnp.tanh(b1_full + mm[:, H:]).astype(bf16)           # h1_{T-1}

    # ---- Fused FC epilogue: out = h1_{T-1} @ Wfc + bfc (lane-padded) ----
    out_ref[...] = (
        jnp.dot(h1, wfc_ref[...], preferred_element_type=jnp.float32)
        + bfc_ref[...]).astype(out_ref.dtype)


def prepare_params(params):
    """One-time weight preprocessing (cast / pad / fuse). Keep the result and
    reuse it across forward calls — this is off the per-call hot path."""
    bf16 = jnp.bfloat16
    H = HIDDEN
    C = params["wfc"].shape[1]
    Cp = ((C + 127) // 128) * 128
    zeros_hh = jnp.zeros((H, H), jnp.float32)
    rhs_fused = jnp.concatenate(
        [jnp.concatenate([params["whh0"], params["wih1"]], axis=1),
         jnp.concatenate([zeros_hh,       params["whh1"]], axis=1)],
        axis=0).astype(bf16)                                   # (2H, 2H)
    return {
        "wih0": params["wih0"].astype(bf16),                   # (D, H)
        "b0":   params["b0"],                                  # (1, H)
        "rhs":  rhs_fused,                                     # (2H, 2H)
        "b1":   params["b1"],                                  # (1, H)
        "wfc":  jnp.pad(params["wfc"], ((0, 0), (0, Cp - C))).astype(bf16),
        "bfc":  jnp.pad(params["bfc"], ((0, 0), (0, Cp - C))),
    }


@jax.jit
def rnn_model_forward(x, prep):
    """x: (B, T, INPUT_SIZE, 1) float32 — mirrors the PyTorch module input."""
    bf16 = jnp.bfloat16
    x = x[..., 0]                               # squeeze(-1): (B, T, D)
    B, T, D = x.shape
    x_tm = jnp.transpose(x, (1, 0, 2))          # (T, B, D) time-major

    # Pad batch to a full sublane so nothing inside the kernel is masked.
    Bp = ((B + 7) // 8) * 8
    if Bp != B:
        x_tm = jnp.pad(x_tm, ((0, 0), (0, Bp - B), (0, 0)))
    x2 = x_tm.reshape(T * Bp, D).astype(bf16)   # (T*Bp, D) bf16

    Cp = prep["wfc"].shape[1]
    args = (x2, prep["wih0"], prep["b0"], prep["rhs"],
            prep["b1"], prep["wfc"], prep["bfc"])

    def full_spec(a):
        nd = a.ndim
        return pl.BlockSpec(a.shape, lambda i, _nd=nd: (0,) * _nd)

    out = pl.pallas_call(
        _rnn_fc_kernel,
        out_shape=jax.ShapeDtypeStruct((Bp, Cp), jnp.float32),
        grid=(1,),
        in_specs=[full_spec(a) for a in args],
        out_specs=pl.BlockSpec((Bp, Cp), lambda i: (0, 0)),
        scratch_shapes=[
            pltpu.VMEM((T * Bp, HIDDEN), jnp.float32),
        ],
        compiler_params=pltpu.CompilerParams(
            dimension_semantics=("arbitrary",)),
    )(*args)

    return out[:B, :NUM_CLASSES]


def init_params(key):
    """Deterministic init following PyTorch's U(-1/sqrt(H), 1/sqrt(H)) scheme.
    RNN biases b_ih + b_hh are pre-summed into a single bias per layer."""
    ks = jax.random.split(key, 9)
    bound = 1.0 / jnp.sqrt(jnp.float32(HIDDEN))
    u = lambda k, shape: jax.random.uniform(
        k, shape, jnp.float32, minval=-bound, maxval=bound)
    return {
        "wih0": u(ks[0], (INPUT_SIZE, HIDDEN)),
        "whh0": u(ks[1], (HIDDEN, HIDDEN)),
        "b0":   u(ks[2], (1, HIDDEN)) + u(ks[3], (1, HIDDEN)),
        "wih1": u(ks[4], (HIDDEN, HIDDEN)),
        "whh1": u(ks[5], (HIDDEN, HIDDEN)),
        "b1":   u(ks[6], (1, HIDDEN)) + u(ks[7], (1, HIDDEN)),
        "wfc":  u(ks[8], (HIDDEN, NUM_CLASSES)),
        "bfc":  jnp.zeros((1, NUM_CLASSES), jnp.float32),
    }


def reference_forward(x, params):
    """Pure-JAX reference of the same math (same bf16-weight / f32-accumulate
    precision choices as the kernel) for the correctness check."""
    bf16 = jnp.bfloat16
    x = jnp.squeeze(x, -1)                     # (B, T, D)
    x_tm = jnp.transpose(x, (1, 0, 2))         # (T, B, D)
    B = x_tm.shape[1]

    def layer(seq, wih, whh, b):
        wih = wih.astype(bf16)
        whh = whh.astype(bf16)
        proj = jnp.dot(seq.astype(bf16), wih,
                       preferred_element_type=jnp.float32) + b   # (T, B, H)

        def step(h, pt):
            h_new = jnp.tanh(pt + jnp.dot(h.astype(bf16), whh,
                                          preferred_element_type=jnp.float32))
            return h_new, h_new

        h0 = jnp.zeros((B, HIDDEN), jnp.float32)
        _, out = lax.scan(step, h0, proj)
        return out                              # (T, B, H)

    o0 = layer(x_tm, params["wih0"], params["whh0"], params["b0"])
    o1 = layer(o0, params["wih1"], params["whh1"], params["b1"])
    last = o1[-1]                               # (B, H)  == out[:, -1, :]
    return (jnp.dot(last.astype(bf16), params["wfc"].astype(bf16),
                    preferred_element_type=jnp.float32)
            + params["bfc"])


if __name__ == "__main__":
    key = jax.random.PRNGKey(0)
    k_x, k_p = jax.random.split(key)

    B, T = 2, 8
    x = jax.random.normal(k_x, (B, T, INPUT_SIZE, 1), jnp.float32)
    params = init_params(k_p)
    prep = prepare_params(params)               # one-time weight prep

    out = rnn_model_forward(x, prep)
    out = jax.block_until_ready(out)

    ref = reference_forward(x, params)
    assert out.shape == (B, NUM_CLASSES)
    assert jnp.allclose(out, ref, atol=1e-2, rtol=1e-2), "mismatch vs JAX reference"

    print("KERNEL_OK")
</pallas_src>

<mosaic_0001>
module attributes {stable_mosaic.version = 11 : i64} {
  func.func @_rnn_fc_kernel(%arg0: i32, %arg1: memref<64x64xbf16, #tpu.memory_space<vmem>>, %arg2: memref<64x128xbf16, #tpu.memory_space<vmem>>, %arg3: memref<1x128xf32, #tpu.memory_space<vmem>>, %arg4: memref<256x256xbf16, #tpu.memory_space<vmem>>, %arg5: memref<1x128xf32, #tpu.memory_space<vmem>>, %arg6: memref<128x128xbf16, #tpu.memory_space<vmem>>, %arg7: memref<1x128xf32, #tpu.memory_space<vmem>>, %arg8: memref<8x128xf32, #tpu.memory_space<vmem>>, %arg9: memref<64x128xf32, #tpu.memory_space<vmem>>) attributes {dimension_semantics = [#tpu.dimension_semantics<arbitrary>], iteration_bounds = array<i64: 1>, scalar_prefetch = 0 : i64, scratch_operands = 1 : i64, tpu.core_type = #tpu.core_type<tc>, window_params = [{pipeline_mode = #tpu.pipeline_mode<synchronous>, transform_indices = @transform_0, window_bounds = array<i64: 64, 64>}, {pipeline_mode = #tpu.pipeline_mode<synchronous>, transform_indices = @transform_1, window_bounds = array<i64: 64, 128>}, {pipeline_mode = #tpu.pipeline_mode<synchronous>, transform_indices = @transform_2, window_bounds = array<i64: 1, 128>}, {pipeline_mode = #tpu.pipeline_mode<synchronous>, transform_indices = @transform_3, window_bounds = array<i64: 256, 256>}, {pipeline_mode = #tpu.pipeline_mode<synchronous>, transform_indices = @transform_4, window_bounds = array<i64: 1, 128>}, {pipeline_mode = #tpu.pipeline_mode<synchronous>, transform_indices = @transform_5, window_bounds = array<i64: 128, 128>}, {pipeline_mode = #tpu.pipeline_mode<synchronous>, transform_indices = @transform_6, window_bounds = array<i64: 1, 128>}, {pipeline_mode = #tpu.pipeline_mode<synchronous>, transform_indices = @transform_7, window_bounds = array<i64: 8, 128>}]} {
    %c0 = arith.constant 0 : index
    %c0_0 = arith.constant 0 : index
    %0 = vector.load %arg1[%c0, %c0_0] : memref<64x64xbf16, #tpu.memory_space<vmem>>, vector<64x64xbf16>
    %c0_1 = arith.constant 0 : index
    %c0_2 = arith.constant 0 : index
    %1 = vector.load %arg2[%c0_1, %c0_2] : memref<64x128xbf16, #tpu.memory_space<vmem>>, vector<64x128xbf16>
    %cst = arith.constant dense<0.000000e+00> : vector<64x128xf32>
    %2 = tpu.matmul %0, %1, %cst {dimension_numbers = #tpu.dot_dimension_numbers<[1], [0], [0], [1], [0, 0, 1, 1], [], []>} : vector<64x64xbf16>, vector<64x128xbf16>, vector<64x128xf32> -> vector<64x128xf32>
    %c0_3 = arith.constant 0 : index
    %c0_4 = arith.constant 0 : index
    %3 = vector.load %arg3[%c0_3, %c0_4] : memref<1x128xf32, #tpu.memory_space<vmem>>, vector<1x128xf32>
    %4 = vector.broadcast %3 : vector<1x128xf32> to vector<64x128xf32>
    %5 = arith.addf %2, %4 : vector<64x128xf32>
    %c0_5 = arith.constant 0 : index
    %c0_6 = arith.constant 0 : index
    %6 = vector.load %arg9[%c0_5, %c0_6] : memref<64x128xf32, #tpu.memory_space<vmem>>, vector<64x128xf32>
    tpu.vector_store %arg9[%c0_5, %c0_6], %5 {strides = array<i32>} : memref<64x128xf32, #tpu.memory_space<vmem>>, vector<64x128xf32>,
    %c0_7 = arith.constant 0 : index
    %c0_8 = arith.constant 0 : index
    %7 = vector.load %arg5[%c0_7, %c0_8] : memref<1x128xf32, #tpu.memory_space<vmem>>, vector<1x128xf32>
    %8 = vector.shape_cast %7 : vector<1x128xf32> to vector<1x128xf32>
    %9 = vector.broadcast %8 : vector<1x128xf32> to vector<8x128xf32>
    %c0_9 = arith.constant 0 : index
    %c0_10 = arith.constant 0 : index
    %10 = vector.load %arg9[%c0_9, %c0_10] : memref<64x128xf32, #tpu.memory_space<vmem>>, vector<8x128xf32>
    %11 = math.tanh %10 : vector<8x128xf32>
    %12 = arith.truncf %11 : vector<8x128xf32> to vector<8x128xbf16>
    %cst_11 = arith.constant 0.000000e+00 : bf16
    %13 = vector.broadcast %cst_11 : bf16 to vector<8x128xbf16>
    %14 = tpu.concatenate %12, %13 in 1 : vector<8x128xbf16>, vector<8x128xbf16> -> vector<8x256xbf16>
    %c0_12 = arith.constant 0 : index
    %c0_13 = arith.constant 0 : index
    %15 = vector.load %arg4[%c0_12, %c0_13] : memref<256x256xbf16, #tpu.memory_space<vmem>>, vector<256x256xbf16>
    %cst_14 = arith.constant dense<0.000000e+00> : vector<8x256xf32>
    %16 = tpu.matmul %14, %15, %cst_14 {dimension_numbers = #tpu.dot_dimension_numbers<[1], [0], [0], [1], [0, 0, 1, 1], [], []>} : vector<8x256xbf16>, vector<256x256xbf16>, vector<8x256xf32> -> vector<8x256xf32>
    %c8 = arith.constant 8 : index
    %c0_15 = arith.constant 0 : index
    %17 = vector.load %arg9[%c8, %c0_15] : memref<64x128xf32, #tpu.memory_space<vmem>>, vector<8x128xf32>
    %18 = vector.extract_strided_slice %16 {offsets = [0, 0], sizes = [8, 128], strides = [1, 1]} : vector<8x256xf32> to vector<8x128xf32>
    %19 = arith.addf %17, %18 : vector<8x128xf32>
    %20 = math.tanh %19 : vector<8x128xf32>
    %21 = arith.truncf %20 : vector<8x128xf32> to vector<8x128xbf16>
    %22 = vector.extract_strided_slice %16 {offsets = [0, 128], sizes = [8, 128], strides = [1, 1]} : vector<8x256xf32> to vector<8x128xf32>
    %23 = arith.addf %9, %22 : vector<8x128xf32>
    %24 = math.tanh %23 : vector<8x128xf32>
    %25 = arith.truncf %24 : vector<8x128xf32> to vector<8x128xbf16>
    %26 = tpu.concatenate %21, %25 in 1 : vector<8x128xbf16>, vector<8x128xbf16> -> vector<8x256xbf16>
    %c0_16 = arith.constant 0 : index
    %c0_17 = arith.constant 0 : index
    %27 = vector.load %arg4[%c0_16, %c0_17] : memref<256x256xbf16, #tpu.memory_space<vmem>>, vector<256x256xbf16>
    %cst_18 = arith.constant dense<0.000000e+00> : vector<8x256xf32>
    %28 = tpu.matmul %26, %27, %cst_18 {dimension_numbers = #tpu.dot_dimension_numbers<[1], [0], [0], [1], [0, 0, 1, 1], [], []>} : vector<8x256xbf16>, vector<256x256xbf16>, vector<8x256xf32> -> vector<8x256xf32>
    %c16 = arith.constant 16 : index
    %c0_19 = arith.constant 0 : index
    %29 = vector.load %arg9[%c16, %c0_19] : memref<64x128xf32, #tpu.memory_space<vmem>>, vector<8x128xf32>
    %30 = vector.extract_strided_slice %28 {offsets = [0, 0], sizes = [8, 128], strides = [1, 1]} : vector<8x256xf32> to vector<8x128xf32>
    %31 = arith.addf %29, %30 : vector<8x128xf32>
    %32 = math.tanh %31 : vector<8x128xf32>
    %33 = arith.truncf %32 : vector<8x128xf32> to vector<8x128xbf16>
    %34 = vector.extract_strided_slice %28 {offsets = [0, 128], sizes = [8, 128], strides = [1, 1]} : vector<8x256xf32> to vector<8x128xf32>
    %35 = arith.addf %9, %34 : vector<8x128xf32>
    %36 = math.tanh %35 : vector<8x128xf32>
    %37 = arith.truncf %36 : vector<8x128xf32> to vector<8x128xbf16>
    %38 = tpu.concatenate %33, %37 in 1 : vector<8x128xbf16>, vector<8x128xbf16> -> vector<8x256xbf16>
    %c0_20 = arith.constant 0 : index
    %c0_21 = arith.constant 0 : index
    %39 = vector.load %arg4[%c0_20, %c0_21] : memref<256x256xbf16, #tpu.memory_space<vmem>>, vector<256x256xbf16>
    %cst_22 = arith.constant dense<0.000000e+00> : vector<8x256xf32>
    %40 = tpu.matmul %38, %39, %cst_22 {dimension_numbers = #tpu.dot_dimension_numbers<[1], [0], [0], [1], [0, 0, 1, 1], [], []>} : vector<8x256xbf16>, vector<256x256xbf16>, vector<8x256xf32> -> vector<8x256xf32>
    %c24 = arith.constant 24 : index
    %c0_23 = arith.constant 0 : index
    %41 = vector.load %arg9[%c24, %c0_23] : memref<64x128xf32, #tpu.memory_space<vmem>>, vector<8x128xf32>
    %42 = vector.extract_strided_slice %40 {offsets = [0, 0], sizes = [8, 128], strides = [1, 1]} : vector<8x256xf32> to vector<8x128xf32>
    %43 = arith.addf %41, %42 : vector<8x128xf32>
    %44 = math.tanh %43 : vector<8x128xf32>
    %45 = arith.truncf %44 : vector<8x128xf32> to vector<8x128xbf16>
    %46 = vector.extract_strided_slice %40 {offsets = [0, 128], sizes = [8, 128], strides = [1, 1]} : vector<8x256xf32> to vector<8x128xf32>
    %47 = arith.addf %9, %46 : vector<8x128xf32>
    %48 = math.tanh %47 : vector<8x128xf32>
    %49 = arith.truncf %48 : vector<8x128xf32> to vector<8x128xbf16>
    %50 = tpu.concatenate %45, %49 in 1 : vector<8x128xbf16>, vector<8x128xbf16> -> vector<8x256xbf16>
    %c0_24 = arith.constant 0 : index
    %c0_25 = arith.constant 0 : index
    %51 = vector.load %arg4[%c0_24, %c0_25] : memref<256x256xbf16, #tpu.memory_space<vmem>>, vector<256x256xbf16>
    %cst_26 = arith.constant dense<0.000000e+00> : vector<8x256xf32>
    %52 = tpu.matmul %50, %51, %cst_26 {dimension_numbers = #tpu.dot_dimension_numbers<[1], [0], [0], [1], [0, 0, 1, 1], [], []>} : vector<8x256xbf16>, vector<256x256xbf16>, vector<8x256xf32> -> vector<8x256xf32>
    %c32 = arith.constant 32 : index
    %c0_27 = arith.constant 0 : index
    %53 = vector.load %arg9[%c32, %c0_27] : memref<64x128xf32, #tpu.memory_space<vmem>>, vector<8x128xf32>
    %54 = vector.extract_strided_slice %52 {offsets = [0, 0], sizes = [8, 128], strides = [1, 1]} : vector<8x256xf32> to vector<8x128xf32>
    %55 = arith.addf %53, %54 : vector<8x128xf32>
    %56 = math.tanh %55 : vector<8x128xf32>
    %57 = arith.truncf %56 : vector<8x128xf32> to vector<8x128xbf16>
    %58 = vector.extract_strided_slice %52 {offsets = [0, 128], sizes = [8, 128], strides = [1, 1]} : vector<8x256xf32> to vector<8x128xf32>
    %59 = arith.addf %9, %58 : vector<8x128xf32>
    %60 = math.tanh %59 : vector<8x128xf32>
    %61 = arith.truncf %60 : vector<8x128xf32> to vector<8x128xbf16>
    %62 = tpu.concatenate %57, %61 in 1 : vector<8x128xbf16>, vector<8x128xbf16> -> vector<8x256xbf16>
    %c0_28 = arith.constant 0 : index
    %c0_29 = arith.constant 0 : index
    %63 = vector.load %arg4[%c0_28, %c0_29] : memref<256x256xbf16, #tpu.memory_space<vmem>>, vector<256x256xbf16>
    %cst_30 = arith.constant dense<0.000000e+00> : vector<8x256xf32>
    %64 = tpu.matmul %62, %63, %cst_30 {dimension_numbers = #tpu.dot_dimension_numbers<[1], [0], [0], [1], [0, 0, 1, 1], [], []>} : vector<8x256xbf16>, vector<256x256xbf16>, vector<8x256xf32> -> vector<8x256xf32>
    %c40 = arith.constant 40 : index
    %c0_31 = arith.constant 0 : index
    %65 = vector.load %arg9[%c40, %c0_31] : memref<64x128xf32, #tpu.memory_space<vmem>>, vector<8x128xf32>
    %66 = vector.extract_strided_slice %64 {offsets = [0, 0], sizes = [8, 128], strides = [1, 1]} : vector<8x256xf32> to vector<8x128xf32>
    %67 = arith.addf %65, %66 : vector<8x128xf32>
    %68 = math.tanh %67 : vector<8x128xf32>
    %69 = arith.truncf %68 : vector<8x128xf32> to vector<8x128xbf16>
    %70 = vector.extract_strided_slice %64 {offsets = [0, 128], sizes = [8, 128], strides = [1, 1]} : vector<8x256xf32> to vector<8x128xf32>
    %71 = arith.addf %9, %70 : vector<8x128xf32>
    %72 = math.tanh %71 : vector<8x128xf32>
    %73 = arith.truncf %72 : vector<8x128xf32> to vector<8x128xbf16>
    %74 = tpu.concatenate %69, %73 in 1 : vector<8x128xbf16>, vector<8x128xbf16> -> vector<8x256xbf16>
    %c0_32 = arith.constant 0 : index
    %c0_33 = arith.constant 0 : index
    %75 = vector.load %arg4[%c0_32, %c0_33] : memref<256x256xbf16, #tpu.memory_space<vmem>>, vector<256x256xbf16>
    %cst_34 = arith.constant dense<0.000000e+00> : vector<8x256xf32>
    %76 = tpu.matmul %74, %75, %cst_34 {dimension_numbers = #tpu.dot_dimension_numbers<[1], [0], [0], [1], [0, 0, 1, 1], [], []>} : vector<8x256xbf16>, vector<256x256xbf16>, vector<8x256xf32> -> vector<8x256xf32>
    %c48 = arith.constant 48 : index
    %c0_35 = arith.constant 0 : index
    %77 = vector.load %arg9[%c48, %c0_35] : memref<64x128xf32, #tpu.memory_space<vmem>>, vector<8x128xf32>
    %78 = vector.extract_strided_slice %76 {offsets = [0, 0], sizes = [8, 128], strides = [1, 1]} : vector<8x256xf32> to vector<8x128xf32>
    %79 = arith.addf %77, %78 : vector<8x128xf32>
    %80 = math.tanh %79 : vector<8x128xf32>
    %81 = arith.truncf %80 : vector<8x128xf32> to vector<8x128xbf16>
    %82 = vector.extract_strided_slice %76 {offsets = [0, 128], sizes = [8, 128], strides = [1, 1]} : vector<8x256xf32> to vector<8x128xf32>
    %83 = arith.addf %9, %82 : vector<8x128xf32>
    %84 = math.tanh %83 : vector<8x128xf32>
    %85 = arith.truncf %84 : vector<8x128xf32> to vector<8x128xbf16>
    %86 = tpu.concatenate %81, %85 in 1 : vector<8x128xbf16>, vector<8x128xbf16> -> vector<8x256xbf16>
    %c0_36 = arith.constant 0 : index
    %c0_37 = arith.constant 0 : index
    %87 = vector.load %arg4[%c0_36, %c0_37] : memref<256x256xbf16, #tpu.memory_space<vmem>>, vector<256x256xbf16>
    %cst_38 = arith.constant dense<0.000000e+00> : vector<8x256xf32>
    %88 = tpu.matmul %86, %87, %cst_38 {dimension_numbers = #tpu.dot_dimension_numbers<[1], [0], [0], [1], [0, 0, 1, 1], [], []>} : vector<8x256xbf16>, vector<256x256xbf16>, vector<8x256xf32> -> vector<8x256xf32>
    %c56 = arith.constant 56 : index
    %c0_39 = arith.constant 0 : index
    %89 = vector.load %arg9[%c56, %c0_39] : memref<64x128xf32, #tpu.memory_space<vmem>>, vector<8x128xf32>
    %90 = vector.extract_strided_slice %88 {offsets = [0, 0], sizes = [8, 128], strides = [1, 1]} : vector<8x256xf32> to vector<8x128xf32>
    %91 = arith.addf %89, %90 : vector<8x128xf32>
    %92 = math.tanh %91 : vector<8x128xf32>
    %93 = arith.truncf %92 : vector<8x128xf32> to vector<8x128xbf16>
    %94 = vector.extract_strided_slice %88 {offsets = [0, 128], sizes = [8, 128], strides = [1, 1]} : vector<8x256xf32> to vector<8x128xf32>
    %95 = arith.addf %9, %94 : vector<8x128xf32>
    %96 = math.tanh %95 : vector<8x128xf32>
    %97 = arith.truncf %96 : vector<8x128xf32> to vector<8x128xbf16>
    %98 = tpu.concatenate %93, %97 in 1 : vector<8x128xbf16>, vector<8x128xbf16> -> vector<8x256xbf16>
    %c0_40 = arith.constant 0 : index
    %c0_41 = arith.constant 0 : index
    %99 = vector.load %arg4[%c0_40, %c0_41] : memref<256x256xbf16, #tpu.memory_space<vmem>>, vector<256x256xbf16>
    %cst_42 = arith.constant dense<0.000000e+00> : vector<8x256xf32>
    %100 = tpu.matmul %98, %99, %cst_42 {dimension_numbers = #tpu.dot_dimension_numbers<[1], [0], [0], [1], [0, 0, 1, 1], [], []>} : vector<8x256xbf16>, vector<256x256xbf16>, vector<8x256xf32> -> vector<8x256xf32>
    %101 = vector.extract_strided_slice %100 {offsets = [0, 128], sizes = [8, 128], strides = [1, 1]} : vector<8x256xf32> to vector<8x128xf32>
    %102 = arith.addf %9, %101 : vector<8x128xf32>
    %103 = math.tanh %102 : vector<8x128xf32>
    %104 = arith.truncf %103 : vector<8x128xf32> to vector<8x128xbf16>
    %c0_43 = arith.constant 0 : index
    %c0_44 = arith.constant 0 : index
    %105 = vector.load %arg6[%c0_43, %c0_44] : memref<128x128xbf16, #tpu.memory_space<vmem>>, vector<128x128xbf16>
    %cst_45 = arith.constant dense<0.000000e+00> : vector<8x128xf32>
    %106 = tpu.matmul %104, %105, %cst_45 {dimension_numbers = #tpu.dot_dimension_numbers<[1], [0], [0], [1], [0, 0, 1, 1], [], []>} : vector<8x128xbf16>, vector<128x128xbf16>, vector<8x128xf32> -> vector<8x128xf32>
    %c0_46 = arith.constant 0 : index
    %c0_47 = arith.constant 0 : index
    %107 = vector.load %arg7[%c0_46, %c0_47] : memref<1x128xf32, #tpu.memory_space<vmem>>, vector<1x128xf32>
    %108 = vector.broadcast %107 : vector<1x128xf32> to vector<8x128xf32>
    %109 = arith.addf %106, %108 : vector<8x128xf32>
    %c0_48 = arith.constant 0 : index
    %c0_49 = arith.constant 0 : index
    %110 = vector.load %arg8[%c0_48, %c0_49] : memref<8x128xf32, #tpu.memory_space<vmem>>, vector<8x128xf32>
    tpu.vector_store %arg8[%c0_48, %c0_49], %109 {strides = array<i32>} : memref<8x128xf32, #tpu.memory_space<vmem>>, vector<8x128xf32>,
    return
  }
  func.func @transform_0(%arg0: i32) -> (i32, i32) {
    %c0_i32 = arith.constant 0 : i32
    %c0_i32_0 = arith.constant 0 : i32
    %c0_i32_1 = arith.constant 0 : i32
    return %c0_i32, %c0_i32_0 : i32, i32
  }
  func.func @transform_1(%arg0: i32) -> (i32, i32) {
    %c0_i32 = arith.constant 0 : i32
    %c0_i32_0 = arith.constant 0 : i32
    %c0_i32_1 = arith.constant 0 : i32
    return %c0_i32, %c0_i32_0 : i32, i32
  }
  func.func @transform_2(%arg0: i32) -> (i32, i32) {
    %c0_i32 = arith.constant 0 : i32
    %c0_i32_0 = arith.constant 0 : i32
    %c0_i32_1 = arith.constant 0 : i32
    return %c0_i32, %c0_i32_0 : i32, i32
  }
  func.func @transform_3(%arg0: i32) -> (i32, i32) {
    %c0_i32 = arith.constant 0 : i32
    %c0_i32_0 = arith.constant 0 : i32
    %c0_i32_1 = arith.constant 0 : i32
    return %c0_i32, %c0_i32_0 : i32, i32
  }
  func.func @transform_4(%arg0: i32) -> (i32, i32) {
    %c0_i32 = arith.constant 0 : i32
    %c0_i32_0 = arith.constant 0 : i32
    %c0_i32_1 = arith.constant 0 : i32
    return %c0_i32, %c0_i32_0 : i32, i32
  }
  func.func @transform_5(%arg0: i32) -> (i32, i32) {
    %c0_i32 = arith.constant 0 : i32
    %c0_i32_0 = arith.constant 0 : i32
    %c0_i32_1 = arith.constant 0 : i32
    return %c0_i32, %c0_i32_0 : i32, i32
  }
  func.func @transform_6(%arg0: i32) -> (i32, i32) {
    %c0_i32 = arith.constant 0 : i32
    %c0_i32_0 = arith.constant 0 : i32
    %c0_i32_1 = arith.constant 0 : i32
    return %c0_i32, %c0_i32_0 : i32, i32
  }
  func.func @transform_7(%arg0: i32) -> (i32, i32) {
    %c0_i32 = arith.constant 0 : i32
    %c0_i32_0 = arith.constant 0 : i32
    %c0_i32_1 = arith.constant 0 : i32
    return %c0_i32, %c0_i32_0 : i32, i32
  }
}

</mosaic_0001>

<llo_original>
// kernel: rnn_model_forward.1
$region0: #{rnn_model_forward.1}
  #allocation0 [shape = 'u32[]', space=smem, size = 0x4, offset = 0x4, fixed_abs, tag = 'smem constant byte address 0x4 - core index']
  #allocation1 [shape = 'u32[72,128]{1,0:T(1,128)}', space=vmem, size = 0x9000, scoped, tag = 'internal scratch']
  #allocation2 [shape = 'f32[64,128]{1,0:T(8,128)}', space=vmem, size = 0x8000, scoped, tag = 'scratch operand']
  %s0 = inlined_call_operand.vmem [shape: bf16[64,64], index: 0, kind: input, shape index: {}]
  %s1 = inlined_call_operand.vmem [shape: bf16[64,128], index: 1, kind: input, shape index: {}]
  %s2 = inlined_call_operand.vmem [shape: f32[1,128], index: 2, kind: input, shape index: {}]
  %s3 = inlined_call_operand.hbm [shape: bf16[256,256], index: 3, kind: input, shape index: {}]
  %s4 = inlined_call_operand.vmem [shape: f32[1,128], index: 4, kind: input, shape index: {}]
  %s5 = inlined_call_operand.vmem [shape: bf16[128,128], index: 5, kind: input, shape index: {}]
  %s6 = inlined_call_operand.vmem [shape: f32[1,128], index: 6, kind: input, shape index: {}]
  %s7 = inlined_call_operand.vmem [shape: f32[8,128], index: 7, kind: output, shape index: {}]
  %s8 = sld [smem:[#allocation0]]
  $region42: #{rnn_model_forward.1} parent=0
    _
  %s10 = ssub.s32 1, %s8
  %s11 = scalar_select 0, %s10, %s8
  $region1: #{rnn_model_forward.1} parent=0
    #allocation3 [shape = 'u8[131072]{0}', space=vmem, size = 0x20000, scoped, tag = 'input window, operand 3, single buffered']
    #allocation4 [shape = 's32[1]{0}', space=sflag, size = 0x4, scoped, tag = 'scoped memory for rnn_model_forward.1']
    %12 = vsyncpa [#allocation4], 0
    // Predicated region
    $region2: #{rnn_model_forward.1} parent=1 // pred_check
      _
    $region3: #{rnn_model_forward.1} parent=1 // pred_check_branch
      %14 = sbr.rel (0) target = $region5
    $region4: #{rnn_model_forward.1} parent=1 // pred_region
      _
    $region5: #{rnn_model_forward.1} parent=1 // pred_fallthru
      _
    // Predicated region
    $region6: #{rnn_model_forward.1} parent=1 // pred_check
      _
    $region7: #{rnn_model_forward.1} parent=1 // pred_check_branch
      %16 = sbr.rel (0) target = $region9
    $region8: #{rnn_model_forward.1} parent=1 // pred_region
      _
    $region9: #{rnn_model_forward.1} parent=1 // pred_fallthru
      _
    // Predicated region
    $region10: #{rnn_model_forward.1} parent=1 // pred_check
      _
    $region11: #{rnn_model_forward.1} parent=1 // pred_check_branch
      %18 = sbr.rel (0) target = $region13
    $region12: #{rnn_model_forward.1} parent=1 // pred_region
      _
    $region13: #{rnn_model_forward.1} parent=1 // pred_fallthru
      _
    // Predicated region
    $region14: #{rnn_model_forward.1} parent=1 // pred_check
      _
    $region15: #{rnn_model_forward.1} parent=1 // pred_check_branch
      %20 = sbr.rel (0) target = $region17
    $region16: #{rnn_model_forward.1} parent=1 // pred_region
      %22 = vsyncadd [#allocation4], 0
      %s23 = sshll.u32 %s3, 4
      %s24 = int_to_ptr.hbm [resolvable:$true] %s23
      %s25 = sshll.u32 [#allocation3], 4
      %s26 = int_to_ptr.vmem [resolvable:$true] %s25
      %31 = dma.hbm_to_vmem [thread:$0]  %s24, 4096, %s26, [#allocation4], 128, 128, 8
    $region17: #{rnn_model_forward.1} parent=1 // pred_fallthru
      _
    // Predicated region
    $region18: #{rnn_model_forward.1} parent=1 // pred_check
      _
    $region19: #{rnn_model_forward.1} parent=1 // pred_check_branch
      %33 = sbr.rel (0) target = $region21
    $region20: #{rnn_model_forward.1} parent=1 // pred_region
      _
    $region21: #{rnn_model_forward.1} parent=1 // pred_fallthru
      _
    // Predicated region
    $region22: #{rnn_model_forward.1} parent=1 // pred_check
      _
    $region23: #{rnn_model_forward.1} parent=1 // pred_check_branch
      %35 = sbr.rel (0) target = $region25
    $region24: #{rnn_model_forward.1} parent=1 // pred_region
      _
    $region25: #{rnn_model_forward.1} parent=1 // pred_fallthru
      _
    // Predicated region
    $region26: #{rnn_model_forward.1} parent=1 // pred_check
      _
    $region27: #{rnn_model_forward.1} parent=1 // pred_check_branch
      %37 = sbr.rel (0) target = $region29
    $region28: #{rnn_model_forward.1} parent=1 // pred_region
      _
    $region29: #{rnn_model_forward.1} parent=1 // pred_fallthru
      _
    // Predicated region
    $region30: #{rnn_model_forward.1} parent=1 // pred_check
      _
    $region31: #{rnn_model_forward.1} parent=1 // pred_check_branch
      %39 = sbr.rel (0) target = $region33
    $region32: #{rnn_model_forward.1} parent=1 // pred_region
      %41 = dma.done [#allocation4], 4096
    $region33: #{rnn_model_forward.1} parent=1 // pred_fallthru
      _
    %v43 = vld [vmem:[%s0] sm:$0xf]
    %v44 = vld [vmem:[%s0 + $0x4] sm:$0xf]
    %v45 = vld [vmem:[%s0 + $0x8] sm:$0xf]
    %v46 = vld [vmem:[%s0 + $0xc] sm:$0xf]
    %v47 = vld [vmem:[%s0 + $0x10] sm:$0xf]
    %v48 = vld [vmem:[%s0 + $0x14] sm:$0xf]
    %v49 = vld [vmem:[%s0 + $0x18] sm:$0xf]
    %v50 = vld [vmem:[%s0 + $0x1c] sm:$0xf]
    %v51 = vld [vmem:[%s1] sm:$0xf]
    %v52 = vld [vmem:[%s1 + $0x4] sm:$0xf]
    %v53 = vld [vmem:[%s1 + $0x8] sm:$0xf]
    %v54 = vld [vmem:[%s1 + $0xc] sm:$0xf]
    %v55 = vld [vmem:[%s1 + $0x10] sm:$0xf]
    %v56 = vld [vmem:[%s1 + $0x14] sm:$0xf]
    %v57 = vld [vmem:[%s1 + $0x18] sm:$0xf]
    %v58 = vld [vmem:[%s1 + $0x1c] sm:$0xf]
    %v59 = vld [vmem:[%s2] sm:$0x1]
    %v61 = vperm.slane %v59, 0
    %v71 = vunpack.c.l.b16 %v43
    %v72 = vunpack.c.l.b16 %v44
    %v73 = vunpack.c.l.b16 %v45
    %v74 = vunpack.c.l.b16 %v46
    %v75 = vunpack.c.l.b16 %v47
    %v76 = vunpack.c.l.b16 %v48
    %v77 = vunpack.c.l.b16 %v49
    %v78 = vunpack.c.l.b16 %v50
    %v79 = vpack.c.b16 %v72, %v71
    %v80 = vpack.c.b16 %v74, %v73
    %v81 = vpack.c.b16 %v76, %v75
    %v82 = vpack.c.b16 %v78, %v77
    %v91 = vunpack.c.l.b16 %v51
    %v92 = vunpack.c.l.b16 %v52
    %v93 = vunpack.c.l.b16 %v53
    %v94 = vunpack.c.l.b16 %v54
    %v95 = vunpack.c.l.b16 %v55
    %v96 = vunpack.c.l.b16 %v56
    %v97 = vunpack.c.l.b16 %v57
    %v98 = vunpack.c.l.b16 %v58
    %v99 = vpack.c.b16 %v92, %v91
    %v100 = vpack.c.b16 %v94, %v93
    %v101 = vpack.c.b16 %v96, %v95
    %v102 = vpack.c.b16 %v98, %v97
    %vm107 = vcmask 523264
    %v109 = vsel %vm107, %v79, 0
    %v112 = vsel %vm107, %v80, 0
    %v115 = vsel %vm107, %v81, 0
    %v118 = vsel %vm107, %v82, 0
    %120 = vmatpush.bf16.msra.mxu0 0
    %121 = vmatpush.bf16.msra.mxu0 0
    %122 = vmatpush.bf16.msra.mxu0 0
    %123 = vmatpush.bf16.msra.mxu0 0
    %124 = vmatpush.bf16.msra.mxu0 %v102
    %125 = vmatpush.bf16.msra.mxu0 %v101
    %126 = vmatpush.bf16.msra.mxu0 %v100
    %127 = vmatpush.bf16.msra.mxu0 %v99
    %128 = vmatmul.bf16.gmra.mxu0 %v109
    %v129 = vpop.f32.mrf.mxu0
    %v130 = vadd.f32 %v61, %v129
    %v131 = vpop.f32.mrf.mxu0
    %v132 = vadd.f32 %v61, %v131
    %133 = vmatmul.bf16.gmra.mxu0 %v112
    %v134 = vpop.f32.mrf.mxu0
    %v135 = vadd.f32 %v61, %v134
    %v136 = vpop.f32.mrf.mxu0
    %v137 = vadd.f32 %v61, %v136
    %138 = vmatmul.bf16.gmra.mxu0 %v115
    %v139 = vpop.f32.mrf.mxu0
    %v140 = vadd.f32 %v61, %v139
    %v141 = vpop.f32.mrf.mxu0
    %v142 = vadd.f32 %v61, %v141
    %143 = vmatmul.bf16.gmra.mxu0 %v118
    %v144 = vpop.f32.mrf.mxu0
    %v145 = vadd.f32 %v61, %v144
    %v146 = vpop.f32.mrf.mxu0
    %v147 = vadd.f32 %v61, %v146
    %148 = vdwg.mxu0
    %149 = vst [vmem:[#allocation2] sm:$0xff] %v130
    %150 = vst [vmem:[#allocation2 + $0x8] sm:$0xff] %v132
    %151 = vst [vmem:[#allocation2 + $0x10] sm:$0xff] %v135
    %152 = vst [vmem:[#allocation2 + $0x18] sm:$0xff] %v137
    %153 = vst [vmem:[#allocation2 + $0x20] sm:$0xff] %v140
    %154 = vst [vmem:[#allocation2 + $0x28] sm:$0xff] %v142
    %155 = vst [vmem:[#allocation2 + $0x30] sm:$0xff] %v145
    %156 = vst [vmem:[#allocation2 + $0x38] sm:$0xff] %v147
    %v157 = vld [vmem:[%s4] sm:$0x1]
    %v159 = vperm.slane %v157, 0
    %v161 = vld [vmem:[#allocation2] sm:$0xff]
    %v162 = vtanh.pop %v161
    %v163 = vpack.c.bf16 %v162, %v162
    %v164 = vld [vmem:[#allocation3] sm:$0xff]
    %v165 = vld [vmem:[#allocation3 + $0x8] sm:$0xff]
    %v166 = vld [vmem:[#allocation3 + $0x10] sm:$0xff]
    %v167 = vld [vmem:[#allocation3 + $0x18] sm:$0xff]
    %v168 = vld [vmem:[#allocation3 + $0x20] sm:$0xff]
    %v169 = vld [vmem:[#allocation3 + $0x28] sm:$0xff]
    %v170 = vld [vmem:[#allocation3 + $0x30] sm:$0xff]
    %v171 = vld [vmem:[#allocation3 + $0x38] sm:$0xff]
    %v172 = vld [vmem:[#allocation3 + $0x40] sm:$0xff]
    %v173 = vld [vmem:[#allocation3 + $0x48] sm:$0xff]
    %v174 = vld [vmem:[#allocation3 + $0x50] sm:$0xff]
    %v175 = vld [vmem:[#allocation3 + $0x58] sm:$0xff]
    %v176 = vld [vmem:[#allocation3 + $0x60] sm:$0xff]
    %v177 = vld [vmem:[#allocation3 + $0x68] sm:$0xff]
    %v178 = vld [vmem:[#allocation3 + $0x70] sm:$0xff]
    %v179 = vld [vmem:[#allocation3 + $0x78] sm:$0xff]
    %v180 = vld [vmem:[#allocation3 + $0x80] sm:$0xff]
    %v181 = vld [vmem:[#allocation3 + $0x88] sm:$0xff]
    %v182 = vld [vmem:[#allocation3 + $0x90] sm:$0xff]
    %v183 = vld [vmem:[#allocation3 + $0x98] sm:$0xff]
    %v184 = vld [vmem:[#allocation3 + $0xa0] sm:$0xff]
    %v185 = vld [vmem:[#allocation3 + $0xa8] sm:$0xff]
    %v186 = vld [vmem:[#allocation3 + $0xb0] sm:$0xff]
    %v187 = vld [vmem:[#allocation3 + $0xb8] sm:$0xff]
    %v188 = vld [vmem:[#allocation3 + $0xc0] sm:$0xff]
    %v189 = vld [vmem:[#allocation3 + $0xc8] sm:$0xff]
    %v190 = vld [vmem:[#allocation3 + $0xd0] sm:$0xff]
    %v191 = vld [vmem:[#allocation3 + $0xd8] sm:$0xff]
    %v192 = vld [vmem:[#allocation3 + $0xe0] sm:$0xff]
    %v193 = vld [vmem:[#allocation3 + $0xe8] sm:$0xff]
    %v194 = vld [vmem:[#allocation3 + $0xf0] sm:$0xff]
    %v195 = vld [vmem:[#allocation3 + $0xf8] sm:$0xff]
    %v228 = vunpack.c.l.b16 %v164
    %v229 = vunpack.c.h.b16 %v164
    %v230 = vunpack.c.l.b16 %v165
    %v231 = vunpack.c.h.b16 %v165
    %v232 = vunpack.c.l.b16 %v166
    %v233 = vunpack.c.h.b16 %v166
    %v234 = vunpack.c.l.b16 %v167
    %v235 = vunpack.c.h.b16 %v167
    %v236 = vunpack.c.l.b16 %v168
    %v237 = vunpack.c.h.b16 %v168
    %v238 = vunpack.c.l.b16 %v169
    %v239 = vunpack.c.h.b16 %v169
    %v240 = vunpack.c.l.b16 %v170
    %v241 = vunpack.c.h.b16 %v170
    %v242 = vunpack.c.l.b16 %v171
    %v243 = vunpack.c.h.b16 %v171
    %v244 = vunpack.c.l.b16 %v172
    %v245 = vunpack.c.h.b16 %v172
    %v246 = vunpack.c.l.b16 %v173
    %v247 = vunpack.c.h.b16 %v173
    %v248 = vunpack.c.l.b16 %v174
    %v249 = vunpack.c.h.b16 %v174
    %v250 = vunpack.c.l.b16 %v175
    %v251 = vunpack.c.h.b16 %v175
    %v252 = vunpack.c.l.b16 %v176
    %v253 = vunpack.c.h.b16 %v176
    %v254 = vunpack.c.l.b16 %v177
    %v255 = vunpack.c.h.b16 %v177
    %v256 = vunpack.c.l.b16 %v178
    %v257 = vunpack.c.h.b16 %v178
    %v258 = vunpack.c.l.b16 %v179
    %v259 = vunpack.c.h.b16 %v179
    %v260 = vunpack.c.l.b16 %v180
    %v261 = vunpack.c.h.b16 %v180
    %v262 = vunpack.c.l.b16 %v181
    %v263 = vunpack.c.h.b16 %v181
    %v264 = vunpack.c.l.b16 %v182
    %v265 = vunpack.c.h.b16 %v182
    %v266 = vunpack.c.l.b16 %v183
    %v267 = vunpack.c.h.b16 %v183
    %v268 = vunpack.c.l.b16 %v184
    %v269 = vunpack.c.h.b16 %v184
    %v270 = vunpack.c.l.b16 %v185
    %v271 = vunpack.c.h.b16 %v185
    %v272 = vunpack.c.l.b16 %v186
    %v273 = vunpack.c.h.b16 %v186
    %v274 = vunpack.c.l.b16 %v187
    %v275 = vunpack.c.h.b16 %v187
    %v276 = vunpack.c.l.b16 %v188
    %v277 = vunpack.c.h.b16 %v188
    %v278 = vunpack.c.l.b16 %v189
    %v279 = vunpack.c.h.b16 %v189
    %v280 = vunpack.c.l.b16 %v190
    %v281 = vunpack.c.h.b16 %v190
    %v282 = vunpack.c.l.b16 %v191
    %v283 = vunpack.c.h.b16 %v191
    %v284 = vunpack.c.l.b16 %v192
    %v285 = vunpack.c.h.b16 %v192
    %v286 = vunpack.c.l.b16 %v193
    %v287 = vunpack.c.h.b16 %v193
    %v288 = vunpack.c.l.b16 %v194
    %v289 = vunpack.c.h.b16 %v194
    %v290 = vunpack.c.l.b16 %v195
    %v291 = vunpack.c.h.b16 %v195
    %v292 = vpack.c.b16 %v230, %v228
    %v293 = vpack.c.b16 %v231, %v229
    %v294 = vpack.c.b16 %v234, %v232
    %v295 = vpack.c.b16 %v235, %v233
    %v296 = vpack.c.b16 %v238, %v236
    %v297 = vpack.c.b16 %v239, %v237
    %v298 = vpack.c.b16 %v242, %v240
    %v299 = vpack.c.b16 %v243, %v241
    %v300 = vpack.c.b16 %v246, %v244
    %v301 = vpack.c.b16 %v247, %v245
    %v302 = vpack.c.b16 %v250, %v248
    %v303 = vpack.c.b16 %v251, %v249
    %v304 = vpack.c.b16 %v254, %v252
    %v305 = vpack.c.b16 %v255, %v253
    %v306 = vpack.c.b16 %v258, %v256
    %v307 = vpack.c.b16 %v259, %v257
    %v308 = vpack.c.b16 %v262, %v260
    %v309 = vpack.c.b16 %v263, %v261
    %v310 = vpack.c.b16 %v266, %v264
    %v311 = vpack.c.b16 %v267, %v265
    %v312 = vpack.c.b16 %v270, %v268
    %v313 = vpack.c.b16 %v271, %v269
    %v314 = vpack.c.b16 %v274, %v272
    %v315 = vpack.c.b16 %v275, %v273
    %v316 = vpack.c.b16 %v278, %v276
    %v317 = vpack.c.b16 %v279, %v277
    %v318 = vpack.c.b16 %v282, %v280
    %v319 = vpack.c.b16 %v283, %v281
    %v320 = vpack.c.b16 %v286, %v284
    %v321 = vpack.c.b16 %v287, %v285
    %v322 = vpack.c.b16 %v290, %v288
    %v323 = vpack.c.b16 %v291, %v289
    %356 = vmatpush.bf16.msra.mxu0 %v306
    %357 = vmatpush.bf16.msra.mxu0 %v304
    %358 = vmatpush.bf16.msra.mxu0 %v302
    %359 = vmatpush.bf16.msra.mxu0 %v300
    %360 = vmatpush.bf16.msra.mxu0 %v298
    %361 = vmatpush.bf16.msra.mxu0 %v296
    %362 = vmatpush.bf16.msra.mxu0 %v294
    %363 = vmatpush.bf16.msra.mxu0 %v292
    %364 = vmatmul.bf16.gmra.mxu0 %v163
    %v365 = vpop.f32.mrf.mxu0
    %v366 = vadd.f32 0.0, %v365
    %v367 = vpop.f32.mrf.mxu0
    %368 = vdwg.mxu0
    %369 = vmatpush.bf16.msra.mxu0 %v322
    %370 = vmatpush.bf16.msra.mxu0 %v320
    %371 = vmatpush.bf16.msra.mxu0 %v318
    %372 = vmatpush.bf16.msra.mxu0 %v316
    %373 = vmatpush.bf16.msra.mxu0 %v314
    %374 = vmatpush.bf16.msra.mxu0 %v312
    %375 = vmatpush.bf16.msra.mxu0 %v310
    %376 = vmatpush.bf16.msra.mxu0 %v308
    %377 = vmatmul.bf16.gmra.mxu0 0
    %v378 = vpop.f32.mrf.mxu0
    %v379 = vadd.f32 %v366, %v378
    %v380 = vpop.f32.mrf.mxu0
    %381 = vdwg.mxu0
    %382 = vmatpush.bf16.msra.mxu0 %v307
    %383 = vmatpush.bf16.msra.mxu0 %v305
    %384 = vmatpush.bf16.msra.mxu0 %v303
    %385 = vmatpush.bf16.msra.mxu0 %v301
    %386 = vmatpush.bf16.msra.mxu0 %v299
    %387 = vmatpush.bf16.msra.mxu0 %v297
    %388 = vmatpush.bf16.msra.mxu0 %v295
    %389 = vmatpush.bf16.msra.mxu0 %v293
    %390 = vmatmul.bf16.gmra.mxu0 %v163
    %v391 = vpop.f32.mrf.mxu0
    %v392 = vadd.f32 0.0, %v391
    %v393 = vpop.f32.mrf.mxu0
    %394 = vdwg.mxu0
    %395 = vmatpush.bf16.msra.mxu0 %v323
    %396 = vmatpush.bf16.msra.mxu0 %v321
    %397 = vmatpush.bf16.msra.mxu0 %v319
    %398 = vmatpush.bf16.msra.mxu0 %v317
    %399 = vmatpush.bf16.msra.mxu0 %v315
    %400 = vmatpush.bf16.msra.mxu0 %v313
    %401 = vmatpush.bf16.msra.mxu0 %v311
    %402 = vmatpush.bf16.msra.mxu0 %v309
    %403 = vmatmul.bf16.gmra.mxu0 0
    %v404 = vpop.f32.mrf.mxu0
    %v405 = vadd.f32 %v392, %v404
    %v406 = vpop.f32.mrf.mxu0
    %407 = vdwg.mxu0
    %v408 = vld [vmem:[#allocation2 + $0x8] sm:$0xff]
    %v409 = vadd.f32 %v408, %v379
    %v410 = vtanh.pop %v409
    %v411 = vpack.c.bf16 %v410, %v410
    %v412 = vadd.f32 %v159, %v405
    %v413 = vtanh.pop %v412
    %v414 = vpack.c.bf16 %v413, %v413
    %415 = vmatpush.bf16.msra.mxu0 %v306
    %416 = vmatpush.bf16.msra.mxu0 %v304
    %417 = vmatpush.bf16.msra.mxu0 %v302
    %418 = vmatpush.bf16.msra.mxu0 %v300
    %419 = vmatpush.bf16.msra.mxu0 %v298
    %420 = vmatpush.bf16.msra.mxu0 %v296
    %421 = vmatpush.bf16.msra.mxu0 %v294
    %422 = vmatpush.bf16.msra.mxu0 %v292
    %423 = vmatmul.bf16.gmra.mxu0 %v411
    %v424 = vpop.f32.mrf.mxu0
    %v425 = vadd.f32 0.0, %v424
    %v426 = vpop.f32.mrf.mxu0
    %427 = vdwg.mxu0
    %428 = vmatpush.bf16.msra.mxu0 %v322
    %429 = vmatpush.bf16.msra.mxu0 %v320
    %430 = vmatpush.bf16.msra.mxu0 %v318
    %431 = vmatpush.bf16.msra.mxu0 %v316
    %432 = vmatpush.bf16.msra.mxu0 %v314
    %433 = vmatpush.bf16.msra.mxu0 %v312
    %434 = vmatpush.bf16.msra.mxu0 %v310
    %435 = vmatpush.bf16.msra.mxu0 %v308
    %436 = vmatmul.bf16.gmra.mxu0 %v414
    %v437 = vpop.f32.mrf.mxu0
    %v438 = vadd.f32 %v425, %v437
    %v439 = vpop.f32.mrf.mxu0
    %440 = vdwg.mxu0
    %441 = vmatpush.bf16.msra.mxu0 %v307
    %442 = vmatpush.bf16.msra.mxu0 %v305
    %443 = vmatpush.bf16.msra.mxu0 %v303
    %444 = vmatpush.bf16.msra.mxu0 %v301
    %445 = vmatpush.bf16.msra.mxu0 %v299
    %446 = vmatpush.bf16.msra.mxu0 %v297
    %447 = vmatpush.bf16.msra.mxu0 %v295
    %448 = vmatpush.bf16.msra.mxu0 %v293
    %449 = vmatmul.bf16.gmra.mxu0 %v411
    %v450 = vpop.f32.mrf.mxu0
    %v451 = vadd.f32 0.0, %v450
    %v452 = vpop.f32.mrf.mxu0
    %453 = vdwg.mxu0
    %454 = vmatpush.bf16.msra.mxu0 %v323
    %455 = vmatpush.bf16.msra.mxu0 %v321
    %456 = vmatpush.bf16.msra.mxu0 %v319
    %457 = vmatpush.bf16.msra.mxu0 %v317
    %458 = vmatpush.bf16.msra.mxu0 %v315
    %459 = vmatpush.bf16.msra.mxu0 %v313
    %460 = vmatpush.bf16.msra.mxu0 %v311
    %461 = vmatpush.bf16.msra.mxu0 %v309
    %462 = vmatmul.bf16.gmra.mxu0 %v414
    %v463 = vpop.f32.mrf.mxu0
    %v464 = vadd.f32 %v451, %v463
    %v465 = vpop.f32.mrf.mxu0
    %466 = vdwg.mxu0
    %v467 = vld [vmem:[#allocation2 + $0x10] sm:$0xff]
    %v468 = vadd.f32 %v467, %v438
    %v469 = vtanh.pop %v468
    %v470 = vpack.c.bf16 %v469, %v469
    %v471 = vadd.f32 %v159, %v464
    %v472 = vtanh.pop %v471
    %v473 = vpack.c.bf16 %v472, %v472
    %474 = vmatpush.bf16.msra.mxu0 %v306
    %475 = vmatpush.bf16.msra.mxu0 %v304
    %476 = vmatpush.bf16.msra.mxu0 %v302
    %477 = vmatpush.bf16.msra.mxu0 %v300
    %478 = vmatpush.bf16.msra.mxu0 %v298
    %479 = vmatpush.bf16.msra.mxu0 %v296
    %480 = vmatpush.bf16.msra.mxu0 %v294
    %481 = vmatpush.bf16.msra.mxu0 %v292
    %482 = vmatmul.bf16.gmra.mxu0 %v470
    %v483 = vpop.f32.mrf.mxu0
    %v484 = vadd.f32 0.0, %v483
    %v485 = vpop.f32.mrf.mxu0
    %486 = vdwg.mxu0
    %487 = vmatpush.bf16.msra.mxu0 %v322
    %488 = vmatpush.bf16.msra.mxu0 %v320
    %489 = vmatpush.bf16.msra.mxu0 %v318
    %490 = vmatpush.bf16.msra.mxu0 %v316
    %491 = vmatpush.bf16.msra.mxu0 %v314
    %492 = vmatpush.bf16.msra.mxu0 %v312
    %493 = vmatpush.bf16.msra.mxu0 %v310
    %494 = vmatpush.bf16.msra.mxu0 %v308
    %495 = vmatmul.bf16.gmra.mxu0 %v473
    %v496 = vpop.f32.mrf.mxu0
    %v497 = vadd.f32 %v484, %v496
    %v498 = vpop.f32.mrf.mxu0
    %499 = vdwg.mxu0
    %500 = vmatpush.bf16.msra.mxu0 %v307
    %501 = vmatpush.bf16.msra.mxu0 %v305
    %502 = vmatpush.bf16.msra.mxu0 %v303
    %503 = vmatpush.bf16.msra.mxu0 %v301
    %504 = vmatpush.bf16.msra.mxu0 %v299
    %505 = vmatpush.bf16.msra.mxu0 %v297
    %506 = vmatpush.bf16.msra.mxu0 %v295
    %507 = vmatpush.bf16.msra.mxu0 %v293
    %508 = vmatmul.bf16.gmra.mxu0 %v470
    %v509 = vpop.f32.mrf.mxu0
    %v510 = vadd.f32 0.0, %v509
    %v511 = vpop.f32.mrf.mxu0
    %512 = vdwg.mxu0
    %513 = vmatpush.bf16.msra.mxu0 %v323
    %514 = vmatpush.bf16.msra.mxu0 %v321
    %515 = vmatpush.bf16.msra.mxu0 %v319
    %516 = vmatpush.bf16.msra.mxu0 %v317
    %517 = vmatpush.bf16.msra.mxu0 %v315
    %518 = vmatpush.bf16.msra.mxu0 %v313
    %519 = vmatpush.bf16.msra.mxu0 %v311
    %520 = vmatpush.bf16.msra.mxu0 %v309
    %521 = vmatmul.bf16.gmra.mxu0 %v473
    %v522 = vpop.f32.mrf.mxu0
    %v523 = vadd.f32 %v510, %v522
    %v524 = vpop.f32.mrf.mxu0
    %525 = vdwg.mxu0
    %v526 = vld [vmem:[#allocation2 + $0x18] sm:$0xff]
    %v527 = vadd.f32 %v526, %v497
    %v528 = vtanh.pop %v527
    %v529 = vpack.c.bf16 %v528, %v528
    %v530 = vadd.f32 %v159, %v523
    %v531 = vtanh.pop %v530
    %v532 = vpack.c.bf16 %v531, %v531
    %533 = vmatpush.bf16.msra.mxu0 %v306
    %534 = vmatpush.bf16.msra.mxu0 %v304
    %535 = vmatpush.bf16.msra.mxu0 %v302
    %536 = vmatpush.bf16.msra.mxu0 %v300
    %537 = vmatpush.bf16.msra.mxu0 %v298
    %538 = vmatpush.bf16.msra.mxu0 %v296
    %539 = vmatpush.bf16.msra.mxu0 %v294
    %540 = vmatpush.bf16.msra.mxu0 %v292
    %541 = vmatmul.bf16.gmra.mxu0 %v529
    %v542 = vpop.f32.mrf.mxu0
    %v543 = vadd.f32 0.0, %v542
    %v544 = vpop.f32.mrf.mxu0
    %545 = vdwg.mxu0
    %546 = vmatpush.bf16.msra.mxu0 %v322
    %547 = vmatpush.bf16.msra.mxu0 %v320
    %548 = vmatpush.bf16.msra.mxu0 %v318
    %549 = vmatpush.bf16.msra.mxu0 %v316
    %550 = vmatpush.bf16.msra.mxu0 %v314
    %551 = vmatpush.bf16.msra.mxu0 %v312
    %552 = vmatpush.bf16.msra.mxu0 %v310
    %553 = vmatpush.bf16.msra.mxu0 %v308
    %554 = vmatmul.bf16.gmra.mxu0 %v532
    %v555 = vpop.f32.mrf.mxu0
    %v556 = vadd.f32 %v543, %v555
    %v557 = vpop.f32.mrf.mxu0
    %558 = vdwg.mxu0
    %559 = vmatpush.bf16.msra.mxu0 %v307
    %560 = vmatpush.bf16.msra.mxu0 %v305
    %561 = vmatpush.bf16.msra.mxu0 %v303
    %562 = vmatpush.bf16.msra.mxu0 %v301
    %563 = vmatpush.bf16.msra.mxu0 %v299
    %564 = vmatpush.bf16.msra.mxu0 %v297
    %565 = vmatpush.bf16.msra.mxu0 %v295
    %566 = vmatpush.bf16.msra.mxu0 %v293
    %567 = vmatmul.bf16.gmra.mxu0 %v529
    %v568 = vpop.f32.mrf.mxu0
    %v569 = vadd.f32 0.0, %v568
    %v570 = vpop.f32.mrf.mxu0
    %571 = vdwg.mxu0
    %572 = vmatpush.bf16.msra.mxu0 %v323
    %573 = vmatpush.bf16.msra.mxu0 %v321
    %574 = vmatpush.bf16.msra.mxu0 %v319
    %575 = vmatpush.bf16.msra.mxu0 %v317
    %576 = vmatpush.bf16.msra.mxu0 %v315
    %577 = vmatpush.bf16.msra.mxu0 %v313
    %578 = vmatpush.bf16.msra.mxu0 %v311
    %579 = vmatpush.bf16.msra.mxu0 %v309
    %580 = vmatmul.bf16.gmra.mxu0 %v532
    %v581 = vpop.f32.mrf.mxu0
    %v582 = vadd.f32 %v569, %v581
    %v583 = vpop.f32.mrf.mxu0
    %584 = vdwg.mxu0
    %v585 = vld [vmem:[#allocation2 + $0x20] sm:$0xff]
    %v586 = vadd.f32 %v585, %v556
    %v587 = vtanh.pop %v586
    %v588 = vpack.c.bf16 %v587, %v587
    %v589 = vadd.f32 %v159, %v582
    %v590 = vtanh.pop %v589
    %v591 = vpack.c.bf16 %v590, %v590
    %592 = vmatpush.bf16.msra.mxu0 %v306
    %593 = vmatpush.bf16.msra.mxu0 %v304
    %594 = vmatpush.bf16.msra.mxu0 %v302
    %595 = vmatpush.bf16.msra.mxu0 %v300
    %596 = vmatpush.bf16.msra.mxu0 %v298
    %597 = vmatpush.bf16.msra.mxu0 %v296
    %598 = vmatpush.bf16.msra.mxu0 %v294
    %599 = vmatpush.bf16.msra.mxu0 %v292
    %600 = vmatmul.bf16.gmra.mxu0 %v588
    %v601 = vpop.f32.mrf.mxu0
    %v602 = vadd.f32 0.0, %v601
    %v603 = vpop.f32.mrf.mxu0
    %604 = vdwg.mxu0
    %605 = vmatpush.bf16.msra.mxu0 %v322
    %606 = vmatpush.bf16.msra.mxu0 %v320
    %607 = vmatpush.bf16.msra.mxu0 %v318
    %608 = vmatpush.bf16.msra.mxu0 %v316
    %609 = vmatpush.bf16.msra.mxu0 %v314
    %610 = vmatpush.bf16.msra.mxu0 %v312
    %611 = vmatpush.bf16.msra.mxu0 %v310
    %612 = vmatpush.bf16.msra.mxu0 %v308
    %613 = vmatmul.bf16.gmra.mxu0 %v591
    %v614 = vpop.f32.mrf.mxu0
    %v615 = vadd.f32 %v602, %v614
    %v616 = vpop.f32.mrf.mxu0
    %617 = vdwg.mxu0
    %618 = vmatpush.bf16.msra.mxu0 %v307
    %619 = vmatpush.bf16.msra.mxu0 %v305
    %620 = vmatpush.bf16.msra.mxu0 %v303
    %621 = vmatpush.bf16.msra.mxu0 %v301
    %622 = vmatpush.bf16.msra.mxu0 %v299
    %623 = vmatpush.bf16.msra.mxu0 %v297
    %624 = vmatpush.bf16.msra.mxu0 %v295
    %625 = vmatpush.bf16.msra.mxu0 %v293
    %626 = vmatmul.bf16.gmra.mxu0 %v588
    %v627 = vpop.f32.mrf.mxu0
    %v628 = vadd.f32 0.0, %v627
    %v629 = vpop.f32.mrf.mxu0
    %630 = vdwg.mxu0
    %631 = vmatpush.bf16.msra.mxu0 %v323
    %632 = vmatpush.bf16.msra.mxu0 %v321
    %633 = vmatpush.bf16.msra.mxu0 %v319
    %634 = vmatpush.bf16.msra.mxu0 %v317
    %635 = vmatpush.bf16.msra.mxu0 %v315
    %636 = vmatpush.bf16.msra.mxu0 %v313
    %637 = vmatpush.bf16.msra.mxu0 %v311
    %638 = vmatpush.bf16.msra.mxu0 %v309
    %639 = vmatmul.bf16.gmra.mxu0 %v591
    %v640 = vpop.f32.mrf.mxu0
    %v641 = vadd.f32 %v628, %v640
    %v642 = vpop.f32.mrf.mxu0
    %643 = vdwg.mxu0
    %v644 = vld [vmem:[#allocation2 + $0x28] sm:$0xff]
    %v645 = vadd.f32 %v644, %v615
    %v646 = vtanh.pop %v645
    %v647 = vpack.c.bf16 %v646, %v646
    %v648 = vadd.f32 %v159, %v641
    %v649 = vtanh.pop %v648
    %v650 = vpack.c.bf16 %v649, %v649
    %651 = vmatpush.bf16.msra.mxu0 %v306
    %652 = vmatpush.bf16.msra.mxu0 %v304
    %653 = vmatpush.bf16.msra.mxu0 %v302
    %654 = vmatpush.bf16.msra.mxu0 %v300
    %655 = vmatpush.bf16.msra.mxu0 %v298
    %656 = vmatpush.bf16.msra.mxu0 %v296
    %657 = vmatpush.bf16.msra.mxu0 %v294
    %658 = vmatpush.bf16.msra.mxu0 %v292
    %659 = vmatmul.bf16.gmra.mxu0 %v647
    %v660 = vpop.f32.mrf.mxu0
    %v661 = vadd.f32 0.0, %v660
    %v662 = vpop.f32.mrf.mxu0
    %663 = vdwg.mxu0
    %664 = vmatpush.bf16.msra.mxu0 %v322
    %665 = vmatpush.bf16.msra.mxu0 %v320
    %666 = vmatpush.bf16.msra.mxu0 %v318
    %667 = vmatpush.bf16.msra.mxu0 %v316
    %668 = vmatpush.bf16.msra.mxu0 %v314
    %669 = vmatpush.bf16.msra.mxu0 %v312
    %670 = vmatpush.bf16.msra.mxu0 %v310
    %671 = vmatpush.bf16.msra.mxu0 %v308
    %672 = vmatmul.bf16.gmra.mxu0 %v650
    %v673 = vpop.f32.mrf.mxu0
    %v674 = vadd.f32 %v661, %v673
    %v675 = vpop.f32.mrf.mxu0
    %676 = vdwg.mxu0
    %677 = vmatpush.bf16.msra.mxu0 %v307
    %678 = vmatpush.bf16.msra.mxu0 %v305
    %679 = vmatpush.bf16.msra.mxu0 %v303
    %680 = vmatpush.bf16.msra.mxu0 %v301
    %681 = vmatpush.bf16.msra.mxu0 %v299
    %682 = vmatpush.bf16.msra.mxu0 %v297
    %683 = vmatpush.bf16.msra.mxu0 %v295
    %684 = vmatpush.bf16.msra.mxu0 %v293
    %685 = vmatmul.bf16.gmra.mxu0 %v647
    %v686 = vpop.f32.mrf.mxu0
    %v687 = vadd.f32 0.0, %v686
    %v688 = vpop.f32.mrf.mxu0
    %689 = vdwg.mxu0
    %690 = vmatpush.bf16.msra.mxu0 %v323
    %691 = vmatpush.bf16.msra.mxu0 %v321
    %692 = vmatpush.bf16.msra.mxu0 %v319
    %693 = vmatpush.bf16.msra.mxu0 %v317
    %694 = vmatpush.bf16.msra.mxu0 %v315
    %695 = vmatpush.bf16.msra.mxu0 %v313
    %696 = vmatpush.bf16.msra.mxu0 %v311
    %697 = vmatpush.bf16.msra.mxu0 %v309
    %698 = vmatmul.bf16.gmra.mxu0 %v650
    %v699 = vpop.f32.mrf.mxu0
    %v700 = vadd.f32 %v687, %v699
    %v701 = vpop.f32.mrf.mxu0
    %702 = vdwg.mxu0
    %v703 = vld [vmem:[#allocation2 + $0x30] sm:$0xff]
    %v704 = vadd.f32 %v703, %v674
    %v705 = vtanh.pop %v704
    %v706 = vpack.c.bf16 %v705, %v705
    %v707 = vadd.f32 %v159, %v700
    %v708 = vtanh.pop %v707
    %v709 = vpack.c.bf16 %v708, %v708
    %710 = vmatpush.bf16.msra.mxu0 %v306
    %711 = vmatpush.bf16.msra.mxu0 %v304
    %712 = vmatpush.bf16.msra.mxu0 %v302
    %713 = vmatpush.bf16.msra.mxu0 %v300
    %714 = vmatpush.bf16.msra.mxu0 %v298
    %715 = vmatpush.bf16.msra.mxu0 %v296
    %716 = vmatpush.bf16.msra.mxu0 %v294
    %717 = vmatpush.bf16.msra.mxu0 %v292
    %718 = vmatmul.bf16.gmra.mxu0 %v706
    %v719 = vpop.f32.mrf.mxu0
    %v720 = vadd.f32 0.0, %v719
    %v721 = vpop.f32.mrf.mxu0
    %722 = vdwg.mxu0
    %723 = vmatpush.bf16.msra.mxu0 %v322
    %724 = vmatpush.bf16.msra.mxu0 %v320
    %725 = vmatpush.bf16.msra.mxu0 %v318
    %726 = vmatpush.bf16.msra.mxu0 %v316
    %727 = vmatpush.bf16.msra.mxu0 %v314
    %728 = vmatpush.bf16.msra.mxu0 %v312
    %729 = vmatpush.bf16.msra.mxu0 %v310
    %730 = vmatpush.bf16.msra.mxu0 %v308
    %731 = vmatmul.bf16.gmra.mxu0 %v709
    %v732 = vpop.f32.mrf.mxu0
    %v733 = vadd.f32 %v720, %v732
    %v734 = vpop.f32.mrf.mxu0
    %735 = vdwg.mxu0
    %736 = vmatpush.bf16.msra.mxu0 %v307
    %737 = vmatpush.bf16.msra.mxu0 %v305
    %738 = vmatpush.bf16.msra.mxu0 %v303
    %739 = vmatpush.bf16.msra.mxu0 %v301
    %740 = vmatpush.bf16.msra.mxu0 %v299
    %741 = vmatpush.bf16.msra.mxu0 %v297
    %742 = vmatpush.bf16.msra.mxu0 %v295
    %743 = vmatpush.bf16.msra.mxu0 %v293
    %744 = vmatmul.bf16.gmra.mxu0 %v706
    %v745 = vpop.f32.mrf.mxu0
    %v746 = vadd.f32 0.0, %v745
    %v747 = vpop.f32.mrf.mxu0
    %748 = vdwg.mxu0
    %749 = vmatpush.bf16.msra.mxu0 %v323
    %750 = vmatpush.bf16.msra.mxu0 %v321
    %751 = vmatpush.bf16.msra.mxu0 %v319
    %752 = vmatpush.bf16.msra.mxu0 %v317
    %753 = vmatpush.bf16.msra.mxu0 %v315
    %754 = vmatpush.bf16.msra.mxu0 %v313
    %755 = vmatpush.bf16.msra.mxu0 %v311
    %756 = vmatpush.bf16.msra.mxu0 %v309
    %757 = vmatmul.bf16.gmra.mxu0 %v709
    %v758 = vpop.f32.mrf.mxu0
    %v759 = vadd.f32 %v746, %v758
    %v760 = vpop.f32.mrf.mxu0
    %761 = vdwg.mxu0
    %v762 = vld [vmem:[#allocation2 + $0x38] sm:$0xff]
    %v763 = vadd.f32 %v762, %v733
    %v764 = vtanh.pop %v763
    %v765 = vpack.c.bf16 %v764, %v764
    %v766 = vadd.f32 %v159, %v759
    %v767 = vtanh.pop %v766
    %v768 = vpack.c.bf16 %v767, %v767
    %769 = vmatpush.bf16.msra.mxu0 %v307
    %770 = vmatpush.bf16.msra.mxu0 %v305
    %771 = vmatpush.bf16.msra.mxu0 %v303
    %772 = vmatpush.bf16.msra.mxu0 %v301
    %773 = vmatpush.bf16.msra.mxu0 %v299
    %774 = vmatpush.bf16.msra.mxu0 %v297
    %775 = vmatpush.bf16.msra.mxu0 %v295
    %776 = vmatpush.bf16.msra.mxu0 %v293
    %777 = vmatmul.bf16.gmra.mxu0 %v765
    %v778 = vpop.f32.mrf.mxu0
    %v779 = vadd.f32 0.0, %v778
    %v780 = vpop.f32.mrf.mxu0
    %781 = vdwg.mxu0
    %782 = vmatpush.bf16.msra.mxu0 %v323
    %783 = vmatpush.bf16.msra.mxu0 %v321
    %784 = vmatpush.bf16.msra.mxu0 %v319
    %785 = vmatpush.bf16.msra.mxu0 %v317
    %786 = vmatpush.bf16.msra.mxu0 %v315
    %787 = vmatpush.bf16.msra.mxu0 %v313
    %788 = vmatpush.bf16.msra.mxu0 %v311
    %789 = vmatpush.bf16.msra.mxu0 %v309
    %790 = vmatmul.bf16.gmra.mxu0 %v768
    %v791 = vpop.f32.mrf.mxu0
    %v792 = vadd.f32 %v779, %v791
    %v793 = vpop.f32.mrf.mxu0
    %794 = vdwg.mxu0
    %v795 = vadd.f32 %v159, %v792
    %v796 = vtanh.pop %v795
    %v797 = vpack.c.bf16 %v796, %v796
    %v798 = vld [vmem:[%s5] sm:$0xf]
    %v799 = vld [vmem:[%s5 + $0x4] sm:$0xf]
    %v800 = vld [vmem:[%s5 + $0x8] sm:$0xf]
    %v801 = vld [vmem:[%s5 + $0xc] sm:$0xf]
    %v802 = vld [vmem:[%s5 + $0x10] sm:$0xf]
    %v803 = vld [vmem:[%s5 + $0x14] sm:$0xf]
    %v804 = vld [vmem:[%s5 + $0x18] sm:$0xf]
    %v805 = vld [vmem:[%s5 + $0x1c] sm:$0xf]
    %v806 = vld [vmem:[%s5 + $0x20] sm:$0xf]
    %v807 = vld [vmem:[%s5 + $0x24] sm:$0xf]
    %v808 = vld [vmem:[%s5 + $0x28] sm:$0xf]
    %v809 = vld [vmem:[%s5 + $0x2c] sm:$0xf]
    %v810 = vld [vmem:[%s5 + $0x30] sm:$0xf]
    %v811 = vld [vmem:[%s5 + $0x34] sm:$0xf]
    %v812 = vld [vmem:[%s5 + $0x38] sm:$0xf]
    %v813 = vld [vmem:[%s5 + $0x3c] sm:$0xf]
    %v814 = vld [vmem:[%s6] sm:$0x1]
    %v816 = vperm.slane %v814, 0
    %v834 = vunpack.c.l.b16 %v798
    %v835 = vunpack.c.l.b16 %v799
    %v836 = vunpack.c.l.b16 %v800
    %v837 = vunpack.c.l.b16 %v801
    %v838 = vunpack.c.l.b16 %v802
    %v839 = vunpack.c.l.b16 %v803
    %v840 = vunpack.c.l.b16 %v804
    %v841 = vunpack.c.l.b16 %v805
    %v842 = vunpack.c.l.b16 %v806
    %v843 = vunpack.c.l.b16 %v807
    %v844 = vunpack.c.l.b16 %v808
    %v845 = vunpack.c.l.b16 %v809
    %v846 = vunpack.c.l.b16 %v810
    %v847 = vunpack.c.l.b16 %v811
    %v848 = vunpack.c.l.b16 %v812
    %v849 = vunpack.c.l.b16 %v813
    %v850 = vpack.c.b16 %v835, %v834
    %v851 = vpack.c.b16 %v837, %v836
    %v852 = vpack.c.b16 %v839, %v838
    %v853 = vpack.c.b16 %v841, %v840
    %v854 = vpack.c.b16 %v843, %v842
    %v855 = vpack.c.b16 %v845, %v844
    %v856 = vpack.c.b16 %v847, %v846
    %v857 = vpack.c.b16 %v849, %v848
    %866 = vmatpush.bf16.msra.mxu0 %v857
    %867 = vmatpush.bf16.msra.mxu0 %v856
    %868 = vmatpush.bf16.msra.mxu0 %v855
    %869 = vmatpush.bf16.msra.mxu0 %v854
    %870 = vmatpush.bf16.msra.mxu0 %v853
    %871 = vmatpush.bf16.msra.mxu0 %v852
    %872 = vmatpush.bf16.msra.mxu0 %v851
    %873 = vmatpush.bf16.msra.mxu0 %v850
    %874 = vmatmul.bf16.gmra.mxu0 %v797
    %v875 = vpop.f32.mrf.mxu0
    %v876 = vadd.f32 %v816, %v875
    %v877 = vpop.f32.mrf.mxu0
    %878 = vdwg.mxu0
    %879 = vst [vmem:[%s7] sm:$0xff] %v876
    // Predicated region
    $region34: #{rnn_model_forward.1} parent=1 // pred_check
      _
    $region35: #{rnn_model_forward.1} parent=1 // pred_check_branch
      %881 = sbr.rel (0) target = $region37
    $region36: #{rnn_model_forward.1} parent=1 // pred_region
      _
    $region37: #{rnn_model_forward.1} parent=1 // pred_fallthru
      _
    // Predicated region
    $region38: #{rnn_model_forward.1} parent=1 // pred_check
      _
    $region39: #{rnn_model_forward.1} parent=1 // pred_check_branch
      %883 = sbr.rel (0) target = $region41
    $region40: #{rnn_model_forward.1} parent=1 // pred_region
      _
    $region41: #{rnn_model_forward.1} parent=1 // pred_fallthru
      _
    %884 = vsyncpa [#allocation4], 1

</llo_original>
